<compile_context>
chip_gen: v5e
topology: v5e:2x2
jax: 0.10.0
libtpu: 0.0.40
codegen_flags: <defaults>
</compile_context>

<pallas_src>
import functools

import jax
import jax.numpy as jnp
from jax.experimental import pallas as pl
from jax.experimental.pallas import tpu as pltpu


def _round_up(a, b):
    return (a + b - 1) // b * b


def _fused_kernel(xp_ref, w_ref, gtab_ref, meta_ref, out_ref, *, pack):
    i = pl.program_id(0)
    rows = xp_ref.shape[0]
    ncol = meta_ref.shape[1]

    # main matmul: packed points (rows, PACK*C) @ block-diag folded weight (PACK*C, PACK*C)
    y = jnp.dot(xp_ref[...], w_ref[...], preferred_element_type=jnp.float32)

    # per-point segment one-hot: point index = pack * packed_row + lane_group(col)
    meta = meta_ref[...]                                  # (3, ncol) int32
    seg_start = meta[0:1, :]
    seg_end = meta[1:2, :]
    lane_grp = meta[2:3, :]
    row = i * rows + jax.lax.broadcasted_iota(jnp.int32, (rows, ncol), 0)
    point = row * pack + lane_grp
    onehot = ((point >= seg_start) & (point < seg_end)).astype(jnp.float32)

    # add per-segment projected pooled features (includes folded BN shift + bias), ReLU, store
    y = y + jnp.dot(onehot, gtab_ref[...], preferred_element_type=jnp.float32)
    out_ref[...] = jnp.maximum(y, 0.0).astype(out_ref.dtype)


def symmetric_transition_up_block(pxo1, params, *, tile_points=2048,
                                  io_dtype=jnp.bfloat16, eps=1e-5):
    """SymmetricTransitionUpBlock.forward(pxo1) for the pxo2=None configuration."""
    # TODO(synk): the pxo2 branch (pointops.knnquery + channel_shrinker +
    # scatter_softmax/scatter_sum upsampling) is a KNN gather/scatter and is not implemented.
    _p, x, o = pxo1
    w1, b1, gamma1, beta1, rmean1, rvar1, w2, b2 = params
    n, c = x.shape
    nb = o.shape[0]
    assert w1.shape == (2 * c, c) and w2.shape == (c, c)

    f32 = jnp.float32
    x32 = x.astype(f32)

    # ---- tiny per-segment prelude (B x C), kept in the wrapper --------------------------
    ends = o.astype(jnp.int32)
    starts = jnp.concatenate([jnp.zeros((1,), jnp.int32), ends[:-1]])
    counts = (ends - starts).astype(f32)
    seg_id = jnp.searchsorted(ends, jnp.arange(n, dtype=jnp.int32), side="right")
    means = jax.ops.segment_sum(x32, seg_id, num_segments=nb) / counts[:, None]
    g = jnp.maximum(means @ w2.astype(f32) + b2.astype(f32), 0.0)         # linear2 (no BN here)

    # fold BatchNorm1d (inference) + bias of linear1 into the weights
    s1 = gamma1.astype(f32) / jnp.sqrt(rvar1.astype(f32) + eps)
    t1 = beta1.astype(f32) - rmean1.astype(f32) * s1
    w1a = w1[:c].astype(f32) * s1[None, :]            # acts on x_i
    w1b = w1[c:].astype(f32) * s1[None, :]            # acts on pooled g_b
    bias_eff = b1.astype(f32) * s1 + t1
    gproj = g @ w1b + bias_eff[None, :]               # (B, C) per-segment additive term

    # ---- lane-dense packing: PACK consecutive points per 128-wide row -------------------
    pack = 128 // c if (c <= 128 and 128 % c == 0) else 1
    lane_w = pack * c

    rows_needed = -(-n // pack)
    tile_rows = max(16, min(max(tile_points // pack, 16), _round_up(rows_needed, 16)))
    tile_rows = _round_up(tile_rows, 16)
    rows_pad = _round_up(rows_needed, tile_rows)      # remainder handled by zero padding
    n_pad = rows_pad * pack
    grid = rows_pad // tile_rows

    xp = jnp.pad(x32, ((0, n_pad - n), (0, 0))).reshape(rows_pad, lane_w).astype(io_dtype)

    eye = jnp.eye(pack, dtype=f32)
    w_big = jnp.einsum("gh,io->giho", eye, w1a).reshape(lane_w, lane_w).astype(io_dtype)

    nb_pad = _round_up(nb, 8)
    gproj_pad = jnp.pad(gproj, ((0, nb_pad - nb), (0, 0)))
    gtab = jnp.einsum("bc,gh->bghc", gproj_pad, eye).reshape(nb_pad * pack, lane_w)

    starts_pad = jnp.pad(starts, (0, nb_pad - nb))    # padded segments: start == end == 0
    ends_pad = jnp.pad(ends, (0, nb_pad - nb))
    meta = jnp.stack([
        jnp.repeat(starts_pad, pack),
        jnp.repeat(ends_pad, pack),
        jnp.tile(jnp.arange(pack, dtype=jnp.int32), nb_pad),
    ]).astype(jnp.int32)                              # (3, nb_pad * pack)
    ncol = nb_pad * pack

    out = pl.pallas_call(
        functools.partial(_fused_kernel, pack=pack),
        out_shape=jax.ShapeDtypeStruct((rows_pad, lane_w), io_dtype),
        grid_spec=pltpu.PrefetchScalarGridSpec(
            num_scalar_prefetch=0,
            grid=(grid,),
            in_specs=[
                pl.BlockSpec((tile_rows, lane_w), lambda i: (i, 0)),   # packed points
                pl.BlockSpec((lane_w, lane_w), lambda i: (0, 0)),      # folded block-diag W1a
                pl.BlockSpec((ncol, lane_w), lambda i: (0, 0)),        # per-segment add table
                pl.BlockSpec((3, ncol), lambda i: (0, 0)),             # [start, end, lane-group]
            ],
            out_specs=pl.BlockSpec((tile_rows, lane_w), lambda i: (i, 0)),
        ),
        # VMEM use here is a few hundred KiB; re-derive / set vmem_limit_bytes explicitly if
        # the channel width or fused depth ever grows (v7x only has 64 MiB of VMEM).
        compiler_params=pltpu.CompilerParams(
            dimension_semantics=("parallel",)),
    )(xp, w_big, gtab, meta)

    return out.reshape(n_pad, c)[:n]


# ------------------------------ test harness -------------------------------------------
def _make_params(key, in_planes):
    c = in_planes
    ks = jax.random.split(key, 8)
    k1 = 1.0 / jnp.sqrt(2.0 * c)
    w1 = jax.random.uniform(ks[0], (2 * c, c), jnp.float32, -k1, k1)
    b1 = jax.random.uniform(ks[1], (c,), jnp.float32, -k1, k1)
    gamma1 = 1.0 + 0.1 * jax.random.normal(ks[2], (c,), jnp.float32)
    beta1 = 0.1 * jax.random.normal(ks[3], (c,), jnp.float32)
    rmean1 = 0.05 * jax.random.normal(ks[4], (c,), jnp.float32)
    rvar1 = jnp.abs(1.0 + 0.1 * jax.random.normal(ks[5], (c,), jnp.float32))
    k2 = 1.0 / jnp.sqrt(1.0 * c)
    w2 = jax.random.uniform(ks[6], (c, c), jnp.float32, -k2, k2)
    b2 = jax.random.uniform(ks[7], (c,), jnp.float32, -k2, k2)
    return (w1, b1, gamma1, beta1, rmean1, rvar1, w2, b2)


def _reference(x, o, params, eps=1e-5):
    """Pure-JAX mirror of the PyTorch forward (pxo2 is None, inference-mode BN)."""
    w1, b1, gamma1, beta1, rmean1, rvar1, w2, b2 = params
    hp = jax.lax.Precision.HIGHEST
    segs = []
    start = 0
    for i in range(o.shape[0]):
        end = int(o[i])
        xb = x[start:end]
        cnt = end - start
        mean = xb.sum(0, keepdims=True) / cnt
        g = jnp.maximum(jnp.dot(mean, w2, precision=hp) + b2, 0.0)      # linear2
        segs.append(jnp.concatenate([xb, jnp.tile(g, (cnt, 1))], axis=1))
        start = end
    xcat = jnp.concatenate(segs, 0)
    z = jnp.dot(xcat, w1, precision=hp) + b1                            # linear1
    z = (z - rmean1) / jnp.sqrt(rvar1 + eps) * gamma1 + beta1
    return jnp.maximum(z, 0.0)


if __name__ == "__main__":
    key = jax.random.PRNGKey(0)
    kp, kx, kw = jax.random.split(key, 3)

    in_planes = 32                 # SymmetricTransitionUpBlock(in_planes=32, out_planes=None)
    n_points, batch = 1001, 2      # non-multiple of tile/pack -> exercises padding & tail
    p = jax.random.normal(kp, (n_points, 3), jnp.float32)
    x = jax.random.normal(kx, (n_points, in_planes), jnp.float32)
    o = jnp.array([519, n_points], dtype=jnp.int32)   # two unequal batch segments

    params = _make_params(kw, in_planes)
    ref = _reference(x, o, params)

    # f32 I/O path: tight check of the fused math (BN folding, segment one-hot, padding).
    y32 = symmetric_transition_up_block([p, x, o], params, io_dtype=jnp.float32)
    y32 = jax.block_until_ready(y32)
    assert y32.shape == (n_points, in_planes)
    err32 = float(jnp.max(jnp.abs(y32.astype(jnp.float32) - ref)))
    assert jnp.allclose(y32.astype(jnp.float32), ref, atol=5e-3, rtol=5e-3), err32

    # bf16 I/O path (default): halves activation/output HBM traffic, f32 accumulation.
    ybf = symmetric_transition_up_block([p, x, o], params)
    ybf = jax.block_until_ready(ybf)
    errbf = float(jnp.max(jnp.abs(ybf.astype(jnp.float32) - ref)))
    assert jnp.allclose(ybf.astype(jnp.float32), ref, atol=8e-2, rtol=8e-2), errbf

    print("KERNEL_OK")
</pallas_src>

<mosaic_0001>
module attributes {stable_mosaic.version = 11 : i64} {
  func.func @_fused_kernel(%arg0: i32, %arg1: memref<256x128xf32, #tpu.memory_space<vmem>>, %arg2: memref<128x128xf32, #tpu.memory_space<vmem>>, %arg3: memref<32x128xf32, #tpu.memory_space<vmem>>, %arg4: memref<3x32xi32, #tpu.memory_space<vmem>>, %arg5: memref<256x128xf32, #tpu.memory_space<vmem>>) attributes {dimension_semantics = [#tpu.dimension_semantics<parallel>], iteration_bounds = array<i64: 1>, scalar_prefetch = 0 : i64, scratch_operands = 0 : i64, tpu.core_type = #tpu.core_type<tc>, window_params = [{transform_indices = @transform_0, window_bounds = array<i64: 256, 128>}, {pipeline_mode = #tpu.pipeline_mode<synchronous>, transform_indices = @transform_1, window_bounds = array<i64: 128, 128>}, {pipeline_mode = #tpu.pipeline_mode<synchronous>, transform_indices = @transform_2, window_bounds = array<i64: 32, 128>}, {pipeline_mode = #tpu.pipeline_mode<synchronous>, transform_indices = @transform_3, window_bounds = array<i64: 3, 32>}, {transform_indices = @transform_4, window_bounds = array<i64: 256, 128>}]} {
    %c0 = arith.constant 0 : index
    %c0_0 = arith.constant 0 : index
    %0 = vector.load %arg1[%c0, %c0_0] : memref<256x128xf32, #tpu.memory_space<vmem>>, vector<256x128xf32>
    %c0_1 = arith.constant 0 : index
    %c0_2 = arith.constant 0 : index
    %1 = vector.load %arg2[%c0_1, %c0_2] : memref<128x128xf32, #tpu.memory_space<vmem>>, vector<128x128xf32>
    %cst = arith.constant dense<0.000000e+00> : vector<256x128xf32>
    %2 = tpu.matmul %0, %1, %cst {dimension_numbers = #tpu.dot_dimension_numbers<[1], [0], [0], [1], [0, 0, 1, 1], [], []>} : vector<256x128xf32>, vector<128x128xf32>, vector<256x128xf32> -> vector<256x128xf32>
    %c0_3 = arith.constant 0 : index
    %c0_4 = arith.constant 0 : index
    %3 = vector.load %arg4[%c0_3, %c0_4] : memref<3x32xi32, #tpu.memory_space<vmem>>, vector<3x32xi32>
    %4 = vector.extract_strided_slice %3 {offsets = [0, 0], sizes = [1, 32], strides = [1, 1]} : vector<3x32xi32> to vector<1x32xi32>
    %5 = vector.extract_strided_slice %3 {offsets = [1, 0], sizes = [1, 32], strides = [1, 1]} : vector<3x32xi32> to vector<1x32xi32>
    %6 = vector.extract_strided_slice %3 {offsets = [2, 0], sizes = [1, 32], strides = [1, 1]} : vector<3x32xi32> to vector<1x32xi32>
    %c256_i32 = arith.constant 256 : i32
    %7 = arith.muli %arg0, %c256_i32 : i32
    %8 = tpu.iota {dimensions = array<i32: 0>} : vector<256x32xi32>
    %9 = vector.broadcast %7 : i32 to vector<256x32xi32>
    %10 = arith.addi %9, %8 : vector<256x32xi32>
    %c4_i32 = arith.constant 4 : i32
    %11 = vector.broadcast %c4_i32 : i32 to vector<256x32xi32>
    %12 = arith.muli %10, %11 : vector<256x32xi32>
    %13 = vector.broadcast %6 : vector<1x32xi32> to vector<256x32xi32>
    %14 = arith.addi %12, %13 : vector<256x32xi32>
    %15 = vector.broadcast %4 : vector<1x32xi32> to vector<256x32xi32>
    %16 = arith.cmpi sge, %14, %15 : vector<256x32xi32>
    %17 = vector.broadcast %5 : vector<1x32xi32> to vector<256x32xi32>
    %18 = arith.cmpi slt, %14, %17 : vector<256x32xi32>
    %19 = arith.andi %16, %18 : vector<256x32xi1>
    %20 = arith.extui %19 : vector<256x32xi1> to vector<256x32xi32>
    %21 = arith.sitofp %20 : vector<256x32xi32> to vector<256x32xf32>
    %c0_5 = arith.constant 0 : index
    %c0_6 = arith.constant 0 : index
    %22 = vector.load %arg3[%c0_5, %c0_6] : memref<32x128xf32, #tpu.memory_space<vmem>>, vector<32x128xf32>
    %cst_7 = arith.constant dense<0.000000e+00> : vector<256x128xf32>
    %23 = tpu.matmul %21, %22, %cst_7 {dimension_numbers = #tpu.dot_dimension_numbers<[1], [0], [0], [1], [0, 0, 1, 1], [], []>} : vector<256x32xf32>, vector<32x128xf32>, vector<256x128xf32> -> vector<256x128xf32>
    %24 = arith.addf %2, %23 : vector<256x128xf32>
    %cst_8 = arith.constant 0.000000e+00 : f32
    %25 = vector.broadcast %cst_8 : f32 to vector<256x128xf32>
    %26 = arith.maximumf %24, %25 : vector<256x128xf32>
    %c0_9 = arith.constant 0 : index
    %c0_10 = arith.constant 0 : index
    %27 = vector.load %arg5[%c0_9, %c0_10] : memref<256x128xf32, #tpu.memory_space<vmem>>, vector<256x128xf32>
    tpu.vector_store %arg5[%c0_9, %c0_10], %26 {strides = array<i32>} : memref<256x128xf32, #tpu.memory_space<vmem>>, vector<256x128xf32>,
    return
  }
  func.func @transform_0(%arg0: i32) -> (i32, i32) {
    %c0_i32 = arith.constant 0 : i32
    %c0_i32_0 = arith.constant 0 : i32
    return %arg0, %c0_i32 : i32, i32
  }
  func.func @transform_1(%arg0: i32) -> (i32, i32) {
    %c0_i32 = arith.constant 0 : i32
    %c0_i32_0 = arith.constant 0 : i32
    %c0_i32_1 = arith.constant 0 : i32
    return %c0_i32, %c0_i32_0 : i32, i32
  }
  func.func @transform_2(%arg0: i32) -> (i32, i32) {
    %c0_i32 = arith.constant 0 : i32
    %c0_i32_0 = arith.constant 0 : i32
    %c0_i32_1 = arith.constant 0 : i32
    return %c0_i32, %c0_i32_0 : i32, i32
  }
  func.func @transform_3(%arg0: i32) -> (i32, i32) {
    %c0_i32 = arith.constant 0 : i32
    %c0_i32_0 = arith.constant 0 : i32
    %c0_i32_1 = arith.constant 0 : i32
    return %c0_i32, %c0_i32_0 : i32, i32
  }
  func.func @transform_4(%arg0: i32) -> (i32, i32) {
    %c0_i32 = arith.constant 0 : i32
    %c0_i32_0 = arith.constant 0 : i32
    return %arg0, %c0_i32 : i32, i32
  }
}

</mosaic_0001>

<llo_original>
// kernel: tpu_custom_call.1
$region0: #{tpu_custom_call.1}
  #allocation0 [shape = 'u32[]', space=smem, size = 0x4, offset = 0x4, fixed_abs, tag = 'smem constant byte address 0x4 - core index']
  #allocation1 [shape = 'u32[72,128]{1,0:T(1,128)}', space=vmem, size = 0x9000, scoped, tag = 'internal scratch']
  %s0 = inlined_call_operand.hbm [shape: f32[256,128], index: 0, kind: input, shape index: {}]
  %s1 = inlined_call_operand.hbm [shape: f32[128,128], index: 1, kind: input, shape index: {}]
  %s2 = inlined_call_operand.hbm [shape: f32[32,128], index: 2, kind: input, shape index: {}]
  %s3 = inlined_call_operand.hbm [shape: s32[3,32], index: 3, kind: input, shape index: {}]
  %s4 = inlined_call_operand.hbm [shape: f32[256,128], index: 4, kind: output, shape index: {}]
  %s5 = sld [smem:[#allocation0]]
  $region42: #{tpu_custom_call.1} parent=0
    _
  %s7 = ssub.s32 1, %s5
  %s8 = scalar_select 0, %s7, %s5
  $region1: #{tpu_custom_call.1} parent=0
    #allocation2 [shape = 'u8[131072]{0}', space=vmem, size = 0x20000, scoped, tag = 'input window, operand 0, single buffered']
    #allocation3 [shape = 's32[1]{0}', space=sflag, size = 0x4, scoped, tag = 'scoped memory for tpu_custom_call.1']
    #allocation4 [shape = 's32[1]{0}', space=sflag, size = 0x4, scoped, tag = 'scoped memory for tpu_custom_call.1']
    #allocation5 [shape = 'u8[65536]{0}', space=vmem, size = 0x10000, scoped, tag = 'input window, operand 1, single buffered']
    #allocation6 [shape = 's32[1]{0}', space=sflag, size = 0x4, scoped, tag = 'scoped memory for tpu_custom_call.1']
    #allocation7 [shape = 'u8[16384]{0}', space=vmem, size = 0x4000, scoped, tag = 'input window, operand 2, single buffered']
    #allocation8 [shape = 'u8[2048]{0}', space=vmem, size = 0x800, scoped, tag = 'input window, operand 3, single buffered']
    #allocation9 [shape = 's32[1]{0}', space=sflag, size = 0x4, scoped, tag = 'scoped memory for tpu_custom_call.1']
    #allocation10 [shape = 'u8[131072]{0}', space=vmem, size = 0x20000, scoped, tag = 'output window, operand 0, single buffered']
    %9 = vsyncpa [#allocation3], 0
    %10 = vsyncpa [#allocation6], 0
    %11 = vsyncpa [#allocation9], 0
    %12 = vsyncpa [#allocation4], 0
    // Predicated region
    $region2: #{tpu_custom_call.1} parent=1 // pred_check
      _
    $region3: #{tpu_custom_call.1} parent=1 // pred_check_branch
      %14 = sbr.rel (0) target = $region5
    $region4: #{tpu_custom_call.1} parent=1 // pred_region
      %16 = vsyncadd [#allocation3], 0
      %s17 = sshll.u32 %s0, 4
      %s18 = int_to_ptr.hbm [resolvable:$true] %s17
      %s19 = sshll.u32 [#allocation2], 4
      %s20 = int_to_ptr.vmem [resolvable:$true] %s19
      %25 = dma.hbm_to_vmem [thread:$0]  %s18, 4096, %s20, [#allocation3], 128, 128, 8
    $region5: #{tpu_custom_call.1} parent=1 // pred_fallthru
      _
    // Predicated region
    $region6: #{tpu_custom_call.1} parent=1 // pred_check
      _
    $region7: #{tpu_custom_call.1} parent=1 // pred_check_branch
      %27 = sbr.rel (0) target = $region9
    $region8: #{tpu_custom_call.1} parent=1 // pred_region
      %29 = vsyncadd [#allocation6], 0
      %s30 = sshll.u32 %s1, 4
      %s31 = int_to_ptr.hbm [resolvable:$true] %s30
      %s32 = sshll.u32 [#allocation5], 4
      %s33 = int_to_ptr.vmem [resolvable:$true] %s32
      %38 = dma.hbm_to_vmem [thread:$0]  %s31, 2048, %s33, [#allocation6], 128, 128, 8
    $region9: #{tpu_custom_call.1} parent=1 // pred_fallthru
      _
    // Predicated region
    $region10: #{tpu_custom_call.1} parent=1 // pred_check
      _
    $region11: #{tpu_custom_call.1} parent=1 // pred_check_branch
      %40 = sbr.rel (0) target = $region13
    $region12: #{tpu_custom_call.1} parent=1 // pred_region
      %42 = vsyncadd [#allocation6], 0
      %s43 = sshll.u32 %s2, 4
      %s44 = int_to_ptr.hbm [resolvable:$true] %s43
      %s45 = sshll.u32 [#allocation7], 4
      %s46 = int_to_ptr.vmem [resolvable:$true] %s45
      %51 = dma.hbm_to_vmem [thread:$0]  %s44, 512, %s46, [#allocation6], 128, 128, 8
    $region13: #{tpu_custom_call.1} parent=1 // pred_fallthru
      _
    // Predicated region
    $region14: #{tpu_custom_call.1} parent=1 // pred_check
      _
    $region15: #{tpu_custom_call.1} parent=1 // pred_check_branch
      %53 = sbr.rel (0) target = $region17
    $region16: #{tpu_custom_call.1} parent=1 // pred_region
      %55 = vsyncadd [#allocation9], 0
      %s57 = sshll.u32 %s3, 4
      %s58 = int_to_ptr.hbm [resolvable:$true] %s57
      %s59 = sshll.u32 [#allocation8], 4
      %s60 = int_to_ptr.vmem [resolvable:$true] %s59
      %62 = dma.hbm_to_vmem [thread:$0]  %s58, 64, %s60, [#allocation9]
    $region17: #{tpu_custom_call.1} parent=1 // pred_fallthru
      _
    // Predicated region
    $region18: #{tpu_custom_call.1} parent=1 // pred_check
      _
    $region19: #{tpu_custom_call.1} parent=1 // pred_check_branch
      %64 = sbr.rel (0) target = $region21
    $region20: #{tpu_custom_call.1} parent=1 // pred_region
      %66 = dma.done [#allocation3], 4096
    $region21: #{tpu_custom_call.1} parent=1 // pred_fallthru
      _
    // Predicated region
    $region22: #{tpu_custom_call.1} parent=1 // pred_check
      _
    $region23: #{tpu_custom_call.1} parent=1 // pred_check_branch
      %68 = sbr.rel (0) target = $region25
    $region24: #{tpu_custom_call.1} parent=1 // pred_region
      %70 = dma.done [#allocation6], 2048
    $region25: #{tpu_custom_call.1} parent=1 // pred_fallthru
      _
    // Predicated region
    $region26: #{tpu_custom_call.1} parent=1 // pred_check
      _
    $region27: #{tpu_custom_call.1} parent=1 // pred_check_branch
      %72 = sbr.rel (0) target = $region29
    $region28: #{tpu_custom_call.1} parent=1 // pred_region
      %74 = dma.done [#allocation6], 512
    $region29: #{tpu_custom_call.1} parent=1 // pred_fallthru
      _
    // Predicated region
    $region30: #{tpu_custom_call.1} parent=1 // pred_check
      _
    $region31: #{tpu_custom_call.1} parent=1 // pred_check_branch
      %76 = sbr.rel (0) target = $region33
    $region32: #{tpu_custom_call.1} parent=1 // pred_region
      %78 = dma.done [#allocation9], 64
    $region33: #{tpu_custom_call.1} parent=1 // pred_fallthru
      _
    %v79 = vld [vmem:[#allocation2] sm:$0xff]
    %v80 = vld [vmem:[#allocation2 + $0x8] sm:$0xff]
    %v81 = vld [vmem:[#allocation2 + $0x10] sm:$0xff]
    %v82 = vld [vmem:[#allocation2 + $0x18] sm:$0xff]
    %v83 = vld [vmem:[#allocation2 + $0x20] sm:$0xff]
    %v84 = vld [vmem:[#allocation2 + $0x28] sm:$0xff]
    %v85 = vld [vmem:[#allocation2 + $0x30] sm:$0xff]
    %v86 = vld [vmem:[#allocation2 + $0x38] sm:$0xff]
    %v87 = vld [vmem:[#allocation2 + $0x40] sm:$0xff]
    %v88 = vld [vmem:[#allocation2 + $0x48] sm:$0xff]
    %v89 = vld [vmem:[#allocation2 + $0x50] sm:$0xff]
    %v90 = vld [vmem:[#allocation2 + $0x58] sm:$0xff]
    %v91 = vld [vmem:[#allocation2 + $0x60] sm:$0xff]
    %v92 = vld [vmem:[#allocation2 + $0x68] sm:$0xff]
    %v93 = vld [vmem:[#allocation2 + $0x70] sm:$0xff]
    %v94 = vld [vmem:[#allocation2 + $0x78] sm:$0xff]
    %v95 = vld [vmem:[#allocation2 + $0x80] sm:$0xff]
    %v96 = vld [vmem:[#allocation2 + $0x88] sm:$0xff]
    %v97 = vld [vmem:[#allocation2 + $0x90] sm:$0xff]
    %v98 = vld [vmem:[#allocation2 + $0x98] sm:$0xff]
    %v99 = vld [vmem:[#allocation2 + $0xa0] sm:$0xff]
    %v100 = vld [vmem:[#allocation2 + $0xa8] sm:$0xff]
    %v101 = vld [vmem:[#allocation2 + $0xb0] sm:$0xff]
    %v102 = vld [vmem:[#allocation2 + $0xb8] sm:$0xff]
    %v103 = vld [vmem:[#allocation2 + $0xc0] sm:$0xff]
    %v104 = vld [vmem:[#allocation2 + $0xc8] sm:$0xff]
    %v105 = vld [vmem:[#allocation2 + $0xd0] sm:$0xff]
    %v106 = vld [vmem:[#allocation2 + $0xd8] sm:$0xff]
    %v107 = vld [vmem:[#allocation2 + $0xe0] sm:$0xff]
    %v108 = vld [vmem:[#allocation2 + $0xe8] sm:$0xff]
    %v109 = vld [vmem:[#allocation2 + $0xf0] sm:$0xff]
    %v110 = vld [vmem:[#allocation2 + $0xf8] sm:$0xff]
    %v111 = vld [vmem:[#allocation5] sm:$0xff]
    %v112 = vld [vmem:[#allocation5 + $0x8] sm:$0xff]
    %v113 = vld [vmem:[#allocation5 + $0x10] sm:$0xff]
    %v114 = vld [vmem:[#allocation5 + $0x18] sm:$0xff]
    %v115 = vld [vmem:[#allocation5 + $0x20] sm:$0xff]
    %v116 = vld [vmem:[#allocation5 + $0x28] sm:$0xff]
    %v117 = vld [vmem:[#allocation5 + $0x30] sm:$0xff]
    %v118 = vld [vmem:[#allocation5 + $0x38] sm:$0xff]
    %v119 = vld [vmem:[#allocation5 + $0x40] sm:$0xff]
    %v120 = vld [vmem:[#allocation5 + $0x48] sm:$0xff]
    %v121 = vld [vmem:[#allocation5 + $0x50] sm:$0xff]
    %v122 = vld [vmem:[#allocation5 + $0x58] sm:$0xff]
    %v123 = vld [vmem:[#allocation5 + $0x60] sm:$0xff]
    %v124 = vld [vmem:[#allocation5 + $0x68] sm:$0xff]
    %v125 = vld [vmem:[#allocation5 + $0x70] sm:$0xff]
    %v126 = vld [vmem:[#allocation5 + $0x78] sm:$0xff]
    %v127 = vld [vmem:[#allocation8] sm:$0x7]
    %s128 = smul.u32 0, 256
    %v129 = vlaneseq
    %v130 = vshrl.u32 %v129, 7
    %v131 = vadd.s32 %v130, 8
    %v132 = vadd.s32 %v130, 16
    %v133 = vadd.s32 %v130, 24
    %v134 = vadd.s32 %v130, 32
    %v135 = vadd.s32 %v130, 40
    %v136 = vadd.s32 %v130, 48
    %v137 = vadd.s32 %v130, 56
    %v138 = vadd.s32 %v130, 64
    %v139 = vadd.s32 %v130, 72
    %v140 = vadd.s32 %v130, 80
    %v141 = vadd.s32 %v130, 88
    %v142 = vadd.s32 %v130, 96
    %v143 = vadd.s32 %v130, 104
    %v144 = vadd.s32 %v130, 112
    %v145 = vadd.s32 %v130, 120
    %v146 = vadd.s32 %v130, 128
    %v147 = vadd.s32 %v130, 136
    %v148 = vadd.s32 %v130, 144
    %v149 = vadd.s32 %v130, 152
    %v150 = vadd.s32 %v130, 160
    %v151 = vadd.s32 %v130, 168
    %v152 = vadd.s32 %v130, 176
    %v153 = vadd.s32 %v130, 184
    %v154 = vadd.s32 %v130, 192
    %v155 = vadd.s32 %v130, 200
    %v156 = vadd.s32 %v130, 208
    %v157 = vadd.s32 %v130, 216
    %v158 = vadd.s32 %v130, 224
    %v159 = vadd.s32 %v130, 232
    %v160 = vadd.s32 %v130, 240
    %v161 = vadd.s32 %v130, 248
    %v162 = vstv %s128
    %v163 = vadd.s32 %v162, %v130
    %v164 = vadd.s32 %v162, %v131
    %v165 = vadd.s32 %v162, %v132
    %v166 = vadd.s32 %v162, %v133
    %v167 = vadd.s32 %v162, %v134
    %v168 = vadd.s32 %v162, %v135
    %v169 = vadd.s32 %v162, %v136
    %v170 = vadd.s32 %v162, %v137
    %v171 = vadd.s32 %v162, %v138
    %v172 = vadd.s32 %v162, %v139
    %v173 = vadd.s32 %v162, %v140
    %v174 = vadd.s32 %v162, %v141
    %v175 = vadd.s32 %v162, %v142
    %v176 = vadd.s32 %v162, %v143
    %v177 = vadd.s32 %v162, %v144
    %v178 = vadd.s32 %v162, %v145
    %v179 = vadd.s32 %v162, %v146
    %v180 = vadd.s32 %v162, %v147
    %v181 = vadd.s32 %v162, %v148
    %v182 = vadd.s32 %v162, %v149
    %v183 = vadd.s32 %v162, %v150
    %v184 = vadd.s32 %v162, %v151
    %v185 = vadd.s32 %v162, %v152
    %v186 = vadd.s32 %v162, %v153
    %v187 = vadd.s32 %v162, %v154
    %v188 = vadd.s32 %v162, %v155
    %v189 = vadd.s32 %v162, %v156
    %v190 = vadd.s32 %v162, %v157
    %v191 = vadd.s32 %v162, %v158
    %v192 = vadd.s32 %v162, %v159
    %v193 = vadd.s32 %v162, %v160
    %v194 = vadd.s32 %v162, %v161
    %v195 = vmul.u32 %v163, 4
    %v196 = vmul.u32 %v164, 4
    %v197 = vmul.u32 %v165, 4
    %v198 = vmul.u32 %v166, 4
    %v199 = vmul.u32 %v167, 4
    %v200 = vmul.u32 %v168, 4
    %v201 = vmul.u32 %v169, 4
    %v202 = vmul.u32 %v170, 4
    %v203 = vmul.u32 %v171, 4
    %v204 = vmul.u32 %v172, 4
    %v205 = vmul.u32 %v173, 4
    %v206 = vmul.u32 %v174, 4
    %v207 = vmul.u32 %v175, 4
    %v208 = vmul.u32 %v176, 4
    %v209 = vmul.u32 %v177, 4
    %v210 = vmul.u32 %v178, 4
    %v211 = vmul.u32 %v179, 4
    %v212 = vmul.u32 %v180, 4
    %v213 = vmul.u32 %v181, 4
    %v214 = vmul.u32 %v182, 4
    %v215 = vmul.u32 %v183, 4
    %v216 = vmul.u32 %v184, 4
    %v217 = vmul.u32 %v185, 4
    %v218 = vmul.u32 %v186, 4
    %v219 = vmul.u32 %v187, 4
    %v220 = vmul.u32 %v188, 4
    %v221 = vmul.u32 %v189, 4
    %v222 = vmul.u32 %v190, 4
    %v223 = vmul.u32 %v191, 4
    %v224 = vmul.u32 %v192, 4
    %v225 = vmul.u32 %v193, 4
    %v226 = vmul.u32 %v194, 4
    %v227 = vperm.slane %v127, 2
    %v228 = vadd.s32 %v195, %v227
    %v229 = vadd.s32 %v196, %v227
    %v230 = vadd.s32 %v197, %v227
    %v231 = vadd.s32 %v198, %v227
    %v232 = vadd.s32 %v199, %v227
    %v233 = vadd.s32 %v200, %v227
    %v234 = vadd.s32 %v201, %v227
    %v235 = vadd.s32 %v202, %v227
    %v236 = vadd.s32 %v203, %v227
    %v237 = vadd.s32 %v204, %v227
    %v238 = vadd.s32 %v205, %v227
    %v239 = vadd.s32 %v206, %v227
    %v240 = vadd.s32 %v207, %v227
    %v241 = vadd.s32 %v208, %v227
    %v242 = vadd.s32 %v209, %v227
    %v243 = vadd.s32 %v210, %v227
    %v244 = vadd.s32 %v211, %v227
    %v245 = vadd.s32 %v212, %v227
    %v246 = vadd.s32 %v213, %v227
    %v247 = vadd.s32 %v214, %v227
    %v248 = vadd.s32 %v215, %v227
    %v249 = vadd.s32 %v216, %v227
    %v250 = vadd.s32 %v217, %v227
    %v251 = vadd.s32 %v218, %v227
    %v252 = vadd.s32 %v219, %v227
    %v253 = vadd.s32 %v220, %v227
    %v254 = vadd.s32 %v221, %v227
    %v255 = vadd.s32 %v222, %v227
    %v256 = vadd.s32 %v223, %v227
    %v257 = vadd.s32 %v224, %v227
    %v258 = vadd.s32 %v225, %v227
    %v259 = vadd.s32 %v226, %v227
    %v260 = vperm.slane %v127, 0
    %vm261 = vcmp.ge.s32.totalorder %v228, %v260
    %vm262 = vcmp.ge.s32.totalorder %v229, %v260
    %vm263 = vcmp.ge.s32.totalorder %v230, %v260
    %vm264 = vcmp.ge.s32.totalorder %v231, %v260
    %vm265 = vcmp.ge.s32.totalorder %v232, %v260
    %vm266 = vcmp.ge.s32.totalorder %v233, %v260
    %vm267 = vcmp.ge.s32.totalorder %v234, %v260
    %vm268 = vcmp.ge.s32.totalorder %v235, %v260
    %vm269 = vcmp.ge.s32.totalorder %v236, %v260
    %vm270 = vcmp.ge.s32.totalorder %v237, %v260
    %vm271 = vcmp.ge.s32.totalorder %v238, %v260
    %vm272 = vcmp.ge.s32.totalorder %v239, %v260
    %vm273 = vcmp.ge.s32.totalorder %v240, %v260
    %vm274 = vcmp.ge.s32.totalorder %v241, %v260
    %vm275 = vcmp.ge.s32.totalorder %v242, %v260
    %vm276 = vcmp.ge.s32.totalorder %v243, %v260
    %vm277 = vcmp.ge.s32.totalorder %v244, %v260
    %vm278 = vcmp.ge.s32.totalorder %v245, %v260
    %vm279 = vcmp.ge.s32.totalorder %v246, %v260
    %vm280 = vcmp.ge.s32.totalorder %v247, %v260
    %vm281 = vcmp.ge.s32.totalorder %v248, %v260
    %vm282 = vcmp.ge.s32.totalorder %v249, %v260
    %vm283 = vcmp.ge.s32.totalorder %v250, %v260
    %vm284 = vcmp.ge.s32.totalorder %v251, %v260
    %vm285 = vcmp.ge.s32.totalorder %v252, %v260
    %vm286 = vcmp.ge.s32.totalorder %v253, %v260
    %vm287 = vcmp.ge.s32.totalorder %v254, %v260
    %vm288 = vcmp.ge.s32.totalorder %v255, %v260
    %vm289 = vcmp.ge.s32.totalorder %v256, %v260
    %vm290 = vcmp.ge.s32.totalorder %v257, %v260
    %vm291 = vcmp.ge.s32.totalorder %v258, %v260
    %vm292 = vcmp.ge.s32.totalorder %v259, %v260
    %v293 = vperm.slane %v127, 1
    %vm294 = vcmp.lt.s32.totalorder %v228, %v293
    %vm295 = vcmp.lt.s32.totalorder %v229, %v293
    %vm296 = vcmp.lt.s32.totalorder %v230, %v293
    %vm297 = vcmp.lt.s32.totalorder %v231, %v293
    %vm298 = vcmp.lt.s32.totalorder %v232, %v293
    %vm299 = vcmp.lt.s32.totalorder %v233, %v293
    %vm300 = vcmp.lt.s32.totalorder %v234, %v293
    %vm301 = vcmp.lt.s32.totalorder %v235, %v293
    %vm302 = vcmp.lt.s32.totalorder %v236, %v293
    %vm303 = vcmp.lt.s32.totalorder %v237, %v293
    %vm304 = vcmp.lt.s32.totalorder %v238, %v293
    %vm305 = vcmp.lt.s32.totalorder %v239, %v293
    %vm306 = vcmp.lt.s32.totalorder %v240, %v293
    %vm307 = vcmp.lt.s32.totalorder %v241, %v293
    %vm308 = vcmp.lt.s32.totalorder %v242, %v293
    %vm309 = vcmp.lt.s32.totalorder %v243, %v293
    %vm310 = vcmp.lt.s32.totalorder %v244, %v293
    %vm311 = vcmp.lt.s32.totalorder %v245, %v293
    %vm312 = vcmp.lt.s32.totalorder %v246, %v293
    %vm313 = vcmp.lt.s32.totalorder %v247, %v293
    %vm314 = vcmp.lt.s32.totalorder %v248, %v293
    %vm315 = vcmp.lt.s32.totalorder %v249, %v293
    %vm316 = vcmp.lt.s32.totalorder %v250, %v293
    %vm317 = vcmp.lt.s32.totalorder %v251, %v293
    %vm318 = vcmp.lt.s32.totalorder %v252, %v293
    %vm319 = vcmp.lt.s32.totalorder %v253, %v293
    %vm320 = vcmp.lt.s32.totalorder %v254, %v293
    %vm321 = vcmp.lt.s32.totalorder %v255, %v293
    %vm322 = vcmp.lt.s32.totalorder %v256, %v293
    %vm323 = vcmp.lt.s32.totalorder %v257, %v293
    %vm324 = vcmp.lt.s32.totalorder %v258, %v293
    %vm325 = vcmp.lt.s32.totalorder %v259, %v293
    %vm326 = vmand %vm261, %vm294
    %vm327 = vmand %vm262, %vm295
    %vm328 = vmand %vm263, %vm296
    %vm329 = vmand %vm264, %vm297
    %vm330 = vmand %vm265, %vm298
    %vm331 = vmand %vm266, %vm299
    %vm332 = vmand %vm267, %vm300
    %vm333 = vmand %vm268, %vm301
    %vm334 = vmand %vm269, %vm302
    %vm335 = vmand %vm270, %vm303
    %vm336 = vmand %vm271, %vm304
    %vm337 = vmand %vm272, %vm305
    %vm338 = vmand %vm273, %vm306
    %vm339 = vmand %vm274, %vm307
    %vm340 = vmand %vm275, %vm308
    %vm341 = vmand %vm276, %vm309
    %vm342 = vmand %vm277, %vm310
    %vm343 = vmand %vm278, %vm311
    %vm344 = vmand %vm279, %vm312
    %vm345 = vmand %vm280, %vm313
    %vm346 = vmand %vm281, %vm314
    %vm347 = vmand %vm282, %vm315
    %vm348 = vmand %vm283, %vm316
    %vm349 = vmand %vm284, %vm317
    %vm350 = vmand %vm285, %vm318
    %vm351 = vmand %vm286, %vm319
    %vm352 = vmand %vm287, %vm320
    %vm353 = vmand %vm288, %vm321
    %vm354 = vmand %vm289, %vm322
    %vm355 = vmand %vm290, %vm323
    %vm356 = vmand %vm291, %vm324
    %vm357 = vmand %vm292, %vm325
    %v358 = vsel %vm326, 1, 0
    %v359 = vsel %vm327, 1, 0
    %v360 = vsel %vm328, 1, 0
    %v361 = vsel %vm329, 1, 0
    %v362 = vsel %vm330, 1, 0
    %v363 = vsel %vm331, 1, 0
    %v364 = vsel %vm332, 1, 0
    %v365 = vsel %vm333, 1, 0
    %v366 = vsel %vm334, 1, 0
    %v367 = vsel %vm335, 1, 0
    %v368 = vsel %vm336, 1, 0
    %v369 = vsel %vm337, 1, 0
    %v370 = vsel %vm338, 1, 0
    %v371 = vsel %vm339, 1, 0
    %v372 = vsel %vm340, 1, 0
    %v373 = vsel %vm341, 1, 0
    %v374 = vsel %vm342, 1, 0
    %v375 = vsel %vm343, 1, 0
    %v376 = vsel %vm344, 1, 0
    %v377 = vsel %vm345, 1, 0
    %v378 = vsel %vm346, 1, 0
    %v379 = vsel %vm347, 1, 0
    %v380 = vsel %vm348, 1, 0
    %v381 = vsel %vm349, 1, 0
    %v382 = vsel %vm350, 1, 0
    %v383 = vsel %vm351, 1, 0
    %v384 = vsel %vm352, 1, 0
    %v385 = vsel %vm353, 1, 0
    %v386 = vsel %vm354, 1, 0
    %v387 = vsel %vm355, 1, 0
    %v388 = vsel %vm356, 1, 0
    %v389 = vsel %vm357, 1, 0
    %v390 = vcvt.s32.f32 %v358
    %v391 = vcvt.s32.f32 %v359
    %v392 = vcvt.s32.f32 %v360
    %v393 = vcvt.s32.f32 %v361
    %v394 = vcvt.s32.f32 %v362
    %v395 = vcvt.s32.f32 %v363
    %v396 = vcvt.s32.f32 %v364
    %v397 = vcvt.s32.f32 %v365
    %v398 = vcvt.s32.f32 %v366
    %v399 = vcvt.s32.f32 %v367
    %v400 = vcvt.s32.f32 %v368
    %v401 = vcvt.s32.f32 %v369
    %v402 = vcvt.s32.f32 %v370
    %v403 = vcvt.s32.f32 %v371
    %v404 = vcvt.s32.f32 %v372
    %v405 = vcvt.s32.f32 %v373
    %v406 = vcvt.s32.f32 %v374
    %v407 = vcvt.s32.f32 %v375
    %v408 = vcvt.s32.f32 %v376
    %v409 = vcvt.s32.f32 %v377
    %v410 = vcvt.s32.f32 %v378
    %v411 = vcvt.s32.f32 %v379
    %v412 = vcvt.s32.f32 %v380
    %v413 = vcvt.s32.f32 %v381
    %v414 = vcvt.s32.f32 %v382
    %v415 = vcvt.s32.f32 %v383
    %v416 = vcvt.s32.f32 %v384
    %v417 = vcvt.s32.f32 %v385
    %v418 = vcvt.s32.f32 %v386
    %v419 = vcvt.s32.f32 %v387
    %v420 = vcvt.s32.f32 %v388
    %v421 = vcvt.s32.f32 %v389
    %v422 = vld [vmem:[#allocation7] sm:$0xff]
    %v423 = vld [vmem:[#allocation7 + $0x8] sm:$0xff]
    %v424 = vld [vmem:[#allocation7 + $0x10] sm:$0xff]
    %v425 = vld [vmem:[#allocation7 + $0x18] sm:$0xff]
    %vm426 = vcmask 261120
    %v428 = vsel %vm426, %v390, 0
    %v431 = vsel %vm426, %v391, 0
    %v434 = vsel %vm426, %v392, 0
    %v437 = vsel %vm426, %v393, 0
    %v440 = vsel %vm426, %v394, 0
    %v443 = vsel %vm426, %v395, 0
    %v446 = vsel %vm426, %v396, 0
    %v449 = vsel %vm426, %v397, 0
    %v452 = vsel %vm426, %v398, 0
    %v455 = vsel %vm426, %v399, 0
    %v458 = vsel %vm426, %v400, 0
    %v461 = vsel %vm426, %v401, 0
    %v464 = vsel %vm426, %v402, 0
    %v467 = vsel %vm426, %v403, 0
    %v470 = vsel %vm426, %v404, 0
    %v473 = vsel %vm426, %v405, 0
    %v476 = vsel %vm426, %v406, 0
    %v479 = vsel %vm426, %v407, 0
    %v482 = vsel %vm426, %v408, 0
    %v485 = vsel %vm426, %v409, 0
    %v488 = vsel %vm426, %v410, 0
    %v491 = vsel %vm426, %v411, 0
    %v494 = vsel %vm426, %v412, 0
    %v497 = vsel %vm426, %v413, 0
    %v500 = vsel %vm426, %v414, 0
    %v503 = vsel %vm426, %v415, 0
    %v506 = vsel %vm426, %v416, 0
    %v509 = vsel %vm426, %v417, 0
    %v512 = vsel %vm426, %v418, 0
    %v515 = vsel %vm426, %v419, 0
    %v518 = vsel %vm426, %v420, 0
    %v521 = vsel %vm426, %v421, 0
    %523 = vmatpush.msra.mxu0 0.0
    %524 = vmatpush.msra.mxu0 0.0
    %525 = vmatpush.msra.mxu0 0.0
    %526 = vmatpush.msra.mxu0 0.0
    %527 = vmatpush.msra.mxu0 0.0
    %528 = vmatpush.msra.mxu0 0.0
    %529 = vmatpush.msra.mxu0 0.0
    %530 = vmatpush.msra.mxu0 0.0
    %531 = vmatpush.msra.mxu0 0.0
    %532 = vmatpush.msra.mxu0 0.0
    %533 = vmatpush.msra.mxu0 0.0
    %534 = vmatpush.msra.mxu0 0.0
    %535 = vmatpush.msra.mxu0 %v425
    %536 = vmatpush.msra.mxu0 %v424
    %537 = vmatpush.msra.mxu0 %v423
    %538 = vmatpush.msra.mxu0 %v422
    %539 = vmatmul.f32.gmra.mxu0 %v428
    %v540 = vpop.f32.mrf.mxu0
    %v541 = vadd.f32 0.0, %v540
    %542 = vmatmul.f32.gmra.mxu0 %v431
    %v543 = vpop.f32.mrf.mxu0
    %v544 = vadd.f32 0.0, %v543
    %545 = vmatmul.f32.gmra.mxu0 %v434
    %v546 = vpop.f32.mrf.mxu0
    %v547 = vadd.f32 0.0, %v546
    %548 = vmatmul.f32.gmra.mxu0 %v437
    %v549 = vpop.f32.mrf.mxu0
    %v550 = vadd.f32 0.0, %v549
    %551 = vmatmul.f32.gmra.mxu0 %v440
    %v552 = vpop.f32.mrf.mxu0
    %v553 = vadd.f32 0.0, %v552
    %554 = vmatmul.f32.gmra.mxu0 %v443
    %v555 = vpop.f32.mrf.mxu0
    %v556 = vadd.f32 0.0, %v555
    %557 = vmatmul.f32.gmra.mxu0 %v446
    %v558 = vpop.f32.mrf.mxu0
    %v559 = vadd.f32 0.0, %v558
    %560 = vmatmul.f32.gmra.mxu0 %v449
    %v561 = vpop.f32.mrf.mxu0
    %v562 = vadd.f32 0.0, %v561
    %563 = vmatmul.f32.gmra.mxu0 %v452
    %v564 = vpop.f32.mrf.mxu0
    %v565 = vadd.f32 0.0, %v564
    %566 = vmatmul.f32.gmra.mxu0 %v455
    %v567 = vpop.f32.mrf.mxu0
    %v568 = vadd.f32 0.0, %v567
    %569 = vmatmul.f32.gmra.mxu0 %v458
    %v570 = vpop.f32.mrf.mxu0
    %v571 = vadd.f32 0.0, %v570
    %572 = vmatmul.f32.gmra.mxu0 %v461
    %v573 = vpop.f32.mrf.mxu0
    %v574 = vadd.f32 0.0, %v573
    %575 = vmatmul.f32.gmra.mxu0 %v464
    %v576 = vpop.f32.mrf.mxu0
    %v577 = vadd.f32 0.0, %v576
    %578 = vmatmul.f32.gmra.mxu0 %v467
    %v579 = vpop.f32.mrf.mxu0
    %v580 = vadd.f32 0.0, %v579
    %581 = vmatmul.f32.gmra.mxu0 %v470
    %v582 = vpop.f32.mrf.mxu0
    %v583 = vadd.f32 0.0, %v582
    %584 = vmatmul.f32.gmra.mxu0 %v473
    %v585 = vpop.f32.mrf.mxu0
    %v586 = vadd.f32 0.0, %v585
    %587 = vmatmul.f32.gmra.mxu0 %v476
    %v588 = vpop.f32.mrf.mxu0
    %v589 = vadd.f32 0.0, %v588
    %590 = vmatmul.f32.gmra.mxu0 %v479
    %v591 = vpop.f32.mrf.mxu0
    %v592 = vadd.f32 0.0, %v591
    %593 = vmatmul.f32.gmra.mxu0 %v482
    %v594 = vpop.f32.mrf.mxu0
    %v595 = vadd.f32 0.0, %v594
    %596 = vmatmul.f32.gmra.mxu0 %v485
    %v597 = vpop.f32.mrf.mxu0
    %v598 = vadd.f32 0.0, %v597
    %599 = vmatmul.f32.gmra.mxu0 %v488
    %v600 = vpop.f32.mrf.mxu0
    %v601 = vadd.f32 0.0, %v600
    %602 = vmatmul.f32.gmra.mxu0 %v491
    %v603 = vpop.f32.mrf.mxu0
    %v604 = vadd.f32 0.0, %v603
    %605 = vmatmul.f32.gmra.mxu0 %v494
    %v606 = vpop.f32.mrf.mxu0
    %v607 = vadd.f32 0.0, %v606
    %608 = vmatmul.f32.gmra.mxu0 %v497
    %v609 = vpop.f32.mrf.mxu0
    %v610 = vadd.f32 0.0, %v609
    %611 = vmatmul.f32.gmra.mxu0 %v500
    %v612 = vpop.f32.mrf.mxu0
    %v613 = vadd.f32 0.0, %v612
    %614 = vmatmul.f32.gmra.mxu0 %v503
    %v615 = vpop.f32.mrf.mxu0
    %v616 = vadd.f32 0.0, %v615
    %617 = vmatmul.f32.gmra.mxu0 %v506
    %v618 = vpop.f32.mrf.mxu0
    %v619 = vadd.f32 0.0, %v618
    %620 = vmatmul.f32.gmra.mxu0 %v509
    %v621 = vpop.f32.mrf.mxu0
    %v622 = vadd.f32 0.0, %v621
    %623 = vmatmul.f32.gmra.mxu0 %v512
    %v624 = vpop.f32.mrf.mxu0
    %v625 = vadd.f32 0.0, %v624
    %626 = vmatmul.f32.gmra.mxu0 %v515
    %v627 = vpop.f32.mrf.mxu0
    %v628 = vadd.f32 0.0, %v627
    %629 = vmatmul.f32.gmra.mxu0 %v518
    %v630 = vpop.f32.mrf.mxu0
    %v631 = vadd.f32 0.0, %v630
    %632 = vmatmul.f32.gmra.mxu0 %v521
    %v633 = vpop.f32.mrf.mxu0
    %v634 = vadd.f32 0.0, %v633
    %635 = vdwg.mxu0
    %636 = vmatpush.msra.mxu0 %v126
    %637 = vmatpush.msra.mxu0 %v125
    %638 = vmatpush.msra.mxu0 %v124
    %639 = vmatpush.msra.mxu0 %v123
    %640 = vmatpush.msra.mxu0 %v122
    %641 = vmatpush.msra.mxu0 %v121
    %642 = vmatpush.msra.mxu0 %v120
    %643 = vmatpush.msra.mxu0 %v119
    %644 = vmatpush.msra.mxu0 %v118
    %645 = vmatpush.msra.mxu0 %v117
    %646 = vmatpush.msra.mxu0 %v116
    %647 = vmatpush.msra.mxu0 %v115
    %648 = vmatpush.msra.mxu0 %v114
    %649 = vmatpush.msra.mxu0 %v113
    %650 = vmatpush.msra.mxu0 %v112
    %651 = vmatpush.msra.mxu0 %v111
    %652 = vmatmul.f32.gmra.mxu0 %v79
    %v653 = vpop.f32.mrf.mxu0
    %v654 = vadd.f32 %v541, %v653
    %655 = vmatmul.f32.gmra.mxu0 %v80
    %v656 = vpop.f32.mrf.mxu0
    %v657 = vadd.f32 %v544, %v656
    %658 = vmatmul.f32.gmra.mxu0 %v81
    %v659 = vpop.f32.mrf.mxu0
    %v660 = vadd.f32 %v547, %v659
    %661 = vmatmul.f32.gmra.mxu0 %v82
    %v662 = vpop.f32.mrf.mxu0
    %v663 = vadd.f32 %v550, %v662
    %664 = vmatmul.f32.gmra.mxu0 %v83
    %v665 = vpop.f32.mrf.mxu0
    %v666 = vadd.f32 %v553, %v665
    %667 = vmatmul.f32.gmra.mxu0 %v84
    %v668 = vpop.f32.mrf.mxu0
    %v669 = vadd.f32 %v556, %v668
    %670 = vmatmul.f32.gmra.mxu0 %v85
    %v671 = vpop.f32.mrf.mxu0
    %v672 = vadd.f32 %v559, %v671
    %673 = vmatmul.f32.gmra.mxu0 %v86
    %v674 = vpop.f32.mrf.mxu0
    %v675 = vadd.f32 %v562, %v674
    %676 = vmatmul.f32.gmra.mxu0 %v87
    %v677 = vpop.f32.mrf.mxu0
    %v678 = vadd.f32 %v565, %v677
    %679 = vmatmul.f32.gmra.mxu0 %v88
    %v680 = vpop.f32.mrf.mxu0
    %v681 = vadd.f32 %v568, %v680
    %682 = vmatmul.f32.gmra.mxu0 %v89
    %v683 = vpop.f32.mrf.mxu0
    %v684 = vadd.f32 %v571, %v683
    %685 = vmatmul.f32.gmra.mxu0 %v90
    %v686 = vpop.f32.mrf.mxu0
    %v687 = vadd.f32 %v574, %v686
    %688 = vmatmul.f32.gmra.mxu0 %v91
    %v689 = vpop.f32.mrf.mxu0
    %v690 = vadd.f32 %v577, %v689
    %691 = vmatmul.f32.gmra.mxu0 %v92
    %v692 = vpop.f32.mrf.mxu0
    %v693 = vadd.f32 %v580, %v692
    %694 = vmatmul.f32.gmra.mxu0 %v93
    %v695 = vpop.f32.mrf.mxu0
    %v696 = vadd.f32 %v583, %v695
    %697 = vmatmul.f32.gmra.mxu0 %v94
    %v698 = vpop.f32.mrf.mxu0
    %v699 = vadd.f32 %v586, %v698
    %700 = vmatmul.f32.gmra.mxu0 %v95
    %v701 = vpop.f32.mrf.mxu0
    %v702 = vadd.f32 %v589, %v701
    %703 = vmatmul.f32.gmra.mxu0 %v96
    %v704 = vpop.f32.mrf.mxu0
    %v705 = vadd.f32 %v592, %v704
    %706 = vmatmul.f32.gmra.mxu0 %v97
    %v707 = vpop.f32.mrf.mxu0
    %v708 = vadd.f32 %v595, %v707
    %709 = vmatmul.f32.gmra.mxu0 %v98
    %v710 = vpop.f32.mrf.mxu0
    %v711 = vadd.f32 %v598, %v710
    %712 = vmatmul.f32.gmra.mxu0 %v99
    %v713 = vpop.f32.mrf.mxu0
    %v714 = vadd.f32 %v601, %v713
    %715 = vmatmul.f32.gmra.mxu0 %v100
    %v716 = vpop.f32.mrf.mxu0
    %v717 = vadd.f32 %v604, %v716
    %718 = vmatmul.f32.gmra.mxu0 %v101
    %v719 = vpop.f32.mrf.mxu0
    %v720 = vadd.f32 %v607, %v719
    %721 = vmatmul.f32.gmra.mxu0 %v102
    %v722 = vpop.f32.mrf.mxu0
    %v723 = vadd.f32 %v610, %v722
    %724 = vmatmul.f32.gmra.mxu0 %v103
    %v725 = vpop.f32.mrf.mxu0
    %v726 = vadd.f32 %v613, %v725
    %727 = vmatmul.f32.gmra.mxu0 %v104
    %v728 = vpop.f32.mrf.mxu0
    %v729 = vadd.f32 %v616, %v728
    %730 = vmatmul.f32.gmra.mxu0 %v105
    %v731 = vpop.f32.mrf.mxu0
    %v732 = vadd.f32 %v619, %v731
    %733 = vmatmul.f32.gmra.mxu0 %v106
    %v734 = vpop.f32.mrf.mxu0
    %v735 = vadd.f32 %v622, %v734
    %736 = vmatmul.f32.gmra.mxu0 %v107
    %v737 = vpop.f32.mrf.mxu0
    %v738 = vadd.f32 %v625, %v737
    %739 = vmatmul.f32.gmra.mxu0 %v108
    %v740 = vpop.f32.mrf.mxu0
    %v741 = vadd.f32 %v628, %v740
    %742 = vmatmul.f32.gmra.mxu0 %v109
    %v743 = vpop.f32.mrf.mxu0
    %v744 = vadd.f32 %v631, %v743
    %745 = vmatmul.f32.gmra.mxu0 %v110
    %v746 = vpop.f32.mrf.mxu0
    %v747 = vadd.f32 %v634, %v746
    %748 = vdwg.mxu0
    %v749 = vmax.f32 %v654, 0.0
    %v750 = vmax.f32 %v657, 0.0
    %v751 = vmax.f32 %v660, 0.0
    %v752 = vmax.f32 %v663, 0.0
    %v753 = vmax.f32 %v666, 0.0
    %v754 = vmax.f32 %v669, 0.0
    %v755 = vmax.f32 %v672, 0.0
    %v756 = vmax.f32 %v675, 0.0
    %v757 = vmax.f32 %v678, 0.0
    %v758 = vmax.f32 %v681, 0.0
    %v759 = vmax.f32 %v684, 0.0
    %v760 = vmax.f32 %v687, 0.0
    %v761 = vmax.f32 %v690, 0.0
    %v762 = vmax.f32 %v693, 0.0
    %v763 = vmax.f32 %v696, 0.0
    %v764 = vmax.f32 %v699, 0.0
    %v765 = vmax.f32 %v702, 0.0
    %v766 = vmax.f32 %v705, 0.0
    %v767 = vmax.f32 %v708, 0.0
    %v768 = vmax.f32 %v711, 0.0
    %v769 = vmax.f32 %v714, 0.0
    %v770 = vmax.f32 %v717, 0.0
    %v771 = vmax.f32 %v720, 0.0
    %v772 = vmax.f32 %v723, 0.0
    %v773 = vmax.f32 %v726, 0.0
    %v774 = vmax.f32 %v729, 0.0
    %v775 = vmax.f32 %v732, 0.0
    %v776 = vmax.f32 %v735, 0.0
    %v777 = vmax.f32 %v738, 0.0
    %v778 = vmax.f32 %v741, 0.0
    %v779 = vmax.f32 %v744, 0.0
    %v780 = vmax.f32 %v747, 0.0
    %781 = vst [vmem:[#allocation10] sm:$0xff] %v749
    %782 = vst [vmem:[#allocation10 + $0x8] sm:$0xff] %v750
    %783 = vst [vmem:[#allocation10 + $0x10] sm:$0xff] %v751
    %784 = vst [vmem:[#allocation10 + $0x18] sm:$0xff] %v752
    %785 = vst [vmem:[#allocation10 + $0x20] sm:$0xff] %v753
    %786 = vst [vmem:[#allocation10 + $0x28] sm:$0xff] %v754
    %787 = vst [vmem:[#allocation10 + $0x30] sm:$0xff] %v755
    %788 = vst [vmem:[#allocation10 + $0x38] sm:$0xff] %v756
    %789 = vst [vmem:[#allocation10 + $0x40] sm:$0xff] %v757
    %790 = vst [vmem:[#allocation10 + $0x48] sm:$0xff] %v758
    %791 = vst [vmem:[#allocation10 + $0x50] sm:$0xff] %v759
    %792 = vst [vmem:[#allocation10 + $0x58] sm:$0xff] %v760
    %793 = vst [vmem:[#allocation10 + $0x60] sm:$0xff] %v761
    %794 = vst [vmem:[#allocation10 + $0x68] sm:$0xff] %v762
    %795 = vst [vmem:[#allocation10 + $0x70] sm:$0xff] %v763
    %796 = vst [vmem:[#allocation10 + $0x78] sm:$0xff] %v764
    %797 = vst [vmem:[#allocation10 + $0x80] sm:$0xff] %v765
    %798 = vst [vmem:[#allocation10 + $0x88] sm:$0xff] %v766
    %799 = vst [vmem:[#allocation10 + $0x90] sm:$0xff] %v767
    %800 = vst [vmem:[#allocation10 + $0x98] sm:$0xff] %v768
    %801 = vst [vmem:[#allocation10 + $0xa0] sm:$0xff] %v769
    %802 = vst [vmem:[#allocation10 + $0xa8] sm:$0xff] %v770
    %803 = vst [vmem:[#allocation10 + $0xb0] sm:$0xff] %v771
    %804 = vst [vmem:[#allocation10 + $0xb8] sm:$0xff] %v772
    %805 = vst [vmem:[#allocation10 + $0xc0] sm:$0xff] %v773
    %806 = vst [vmem:[#allocation10 + $0xc8] sm:$0xff] %v774
    %807 = vst [vmem:[#allocation10 + $0xd0] sm:$0xff] %v775
    %808 = vst [vmem:[#allocation10 + $0xd8] sm:$0xff] %v776
    %809 = vst [vmem:[#allocation10 + $0xe0] sm:$0xff] %v777
    %810 = vst [vmem:[#allocation10 + $0xe8] sm:$0xff] %v778
    %811 = vst [vmem:[#allocation10 + $0xf0] sm:$0xff] %v779
    %812 = vst [vmem:[#allocation10 + $0xf8] sm:$0xff] %v780
    // Predicated region
    $region34: #{tpu_custom_call.1} parent=1 // pred_check
      _
    $region35: #{tpu_custom_call.1} parent=1 // pred_check_branch
      %814 = sbr.rel (0) target = $region37
    $region36: #{tpu_custom_call.1} parent=1 // pred_region
      %816 = vsyncadd [#allocation4], 0
      %s817 = sshll.u32 [#allocation10], 4
      %s818 = int_to_ptr.vmem [resolvable:$true] %s817
      %s819 = sshll.u32 %s4, 4
      %s820 = int_to_ptr.hbm [resolvable:$true] %s819
      %825 = dma.vmem_to_hbm [thread:$0]  %s818, 4096, %s820, [#allocation4], 128, 128, 8
    $region37: #{tpu_custom_call.1} parent=1 // pred_fallthru
      _
    // Predicated region
    $region38: #{tpu_custom_call.1} parent=1 // pred_check
      _
    $region39: #{tpu_custom_call.1} parent=1 // pred_check_branch
      %827 = sbr.rel (0) target = $region41
    $region40: #{tpu_custom_call.1} parent=1 // pred_region
      %829 = dma.done [#allocation4], 4096
    $region41: #{tpu_custom_call.1} parent=1 // pred_fallthru
      _
    %830 = vsyncpa [#allocation3], 1
    %831 = vsyncpa [#allocation6], 1
    %832 = vsyncpa [#allocation9], 1
    %833 = vsyncpa [#allocation4], 1

</llo_original>
